<compile_context>
chip_gen: v6e
topology: v6e:2x2x1
jax: 0.10.0
libtpu: 0.0.40
codegen_flags: <defaults>
</compile_context>

<pallas_src>
import functools
import math

import jax
import jax.numpy as jnp
import numpy as np
from jax.experimental import pallas as pl
from jax.experimental.pallas import tpu as pltpu

_MIB = 1024 * 1024


def _vmem_capacity_bytes():
    try:
        cap = int(pltpu.get_tpu_info().vmem_capacity_bytes)
    except Exception:
        cap = 64 * _MIB  # assume the smallest (v7x) physical VMEM per core
    return max(cap, 64 * _MIB)


def _row_block(lead, per_row_bytes, budget):
    """Largest rule-compliant row block whose double-buffered residency fits."""
    if lead < 8:
        # Block equal to the full leading dim satisfies the (8,128) rule.
        return lead if 2 * lead * per_row_bytes <= budget else None
    best = None
    r = 8
    while r <= min(lead, 256):
        if 2 * r * per_row_bytes <= budget:
            best = r
        r *= 2
    return best


def _make_full_row_kernel(offsets, tails):
    """Copy each (TLr, tail_i) input block into its static lane slice."""

    def kernel(*refs):
        out_ref = refs[-1]
        in_refs = refs[:-1]
        for in_ref, off, t in zip(in_refs, offsets, tails):
            v = in_ref[...]
            if v.dtype != out_ref.dtype:
                v = v.astype(out_ref.dtype)  # fused cast, hidden under the copy
            out_ref[:, off:off + t] = v

    return kernel


def _chunk_kernel(owner_ref, srcs_ref, *refs):
    """Lane-tiled path: copy the owning input's (TLr, LT) block to the output."""
    del srcs_ref  # only consumed by the index_maps
    out_ref = refs[-1]
    in_refs = refs[:-1]
    c = pl.program_id(1)
    owner = owner_ref[c]
    for i, in_ref in enumerate(in_refs):
        @pl.when(owner == i)
        def _copy(in_ref=in_ref):
            v = in_ref[...]
            if v.dtype != out_ref.dtype:
                v = v.astype(out_ref.dtype)
            out_ref[...] = v


def _run_full_rows(flat_xs, tails, offsets, out_dtype, lead, tail_total, tlr,
                   vmem_limit):
    kernel = _make_full_row_kernel(offsets, tails)
    return pl.pallas_call(
        kernel,
        out_shape=jax.ShapeDtypeStruct((lead, tail_total), out_dtype),
        grid=(pl.cdiv(lead, tlr),),
        in_specs=[pl.BlockSpec((tlr, t), lambda r: (r, 0)) for t in tails],
        out_specs=pl.BlockSpec((tlr, tail_total), lambda r: (r, 0)),
        compiler_params=pltpu.CompilerParams(
            dimension_semantics=("parallel",),
            vmem_limit_bytes=vmem_limit,
        ),
    )(*flat_xs)


def concat_pallas(xs, dimension=1, vmem_budget_bytes=None):
    """Pallas equivalent of Concat(dimension).forward(list_of_tensors)."""
    xs = list(xs)
    ndim = xs[0].ndim
    d = dimension % ndim

    lead = int(math.prod(xs[0].shape[:d])) if d > 0 else 1
    tails = [int(math.prod(x.shape[d:])) for x in xs]
    tail_total = int(sum(tails))
    offsets, acc = [], 0
    for t in tails:
        offsets.append(acc)
        acc += t

    # torch.cat-style dtype promotion (fused into the kernel store).
    out_dtype = jnp.result_type(*[x.dtype for x in xs])
    out_shape = list(xs[0].shape)
    out_shape[d] = sum(int(x.shape[d]) for x in xs)
    out_shape = tuple(out_shape)

    # Free (metadata-only) reshapes to the lane-dense 2D layout.
    flat_xs = [x.reshape(lead, t) for x, t in zip(xs, tails)]

    cap = _vmem_capacity_bytes()
    budget = (vmem_budget_bytes if vmem_budget_bytes is not None
              else min(cap // 2, 24 * _MIB))

    out_bytes = jnp.dtype(out_dtype).itemsize
    in_bytes = [jnp.dtype(x.dtype).itemsize for x in xs]
    per_row_bytes = (tail_total * out_bytes
                     + sum(t * b for t, b in zip(tails, in_bytes)))

    def _limit(resident):
        return int(min(max(resident + 8 * _MIB, 32 * _MIB), cap - 16 * _MIB))

    # ---------------- Path A: full-tail rows, >=8-row sublane blocks --------
    tlr = _row_block(lead, per_row_bytes, budget)
    if tlr is not None:
        resident = 2 * tlr * per_row_bytes
        out2d = _run_full_rows(flat_xs, tails, offsets, out_dtype, lead,
                               tail_total, tlr, _limit(resident))
        return out2d.reshape(out_shape)

    # ---------------- Path B: lane (tail) tiling via chunk ownership --------
    n = len(xs)
    tlr_b = lead if lead < 8 else 8
    per_elem_bytes = out_bytes + sum(in_bytes)
    g = functools.reduce(math.gcd, tails)
    max_lt = budget // (2 * tlr_b * per_elem_bytes)

    lt = None
    if g % 128 == 0 and max_lt >= 128:
        k = min(max_lt // 128, g // 128)
        while k >= 1 and (g // 128) % k != 0:
            k -= 1
        if k >= 1:
            lt = 128 * k
    if lt is not None and n * (tail_total // lt) * 4 > 256 * 1024:
        lt = None  # keep SMEM ownership tables small

    if lt is None:
        # Pathological fallback (tails not 128-divisible / tables too big):
        # correct full-row path with the smallest compliant row block.
        # TODO(synk): repack to a (rows, 128)-major layout or fuse into the
        # consumer to bound VMEM in this case.
        tlr = lead if lead < 8 else 8
        resident = 2 * tlr * per_row_bytes
        out2d = _run_full_rows(flat_xs, tails, offsets, out_dtype, lead,
                               tail_total, tlr, _limit(resident))
        return out2d.reshape(out_shape)

    chunks_per_input = [t // lt for t in tails]
    n_chunks = sum(chunks_per_input)

    owner = np.zeros((n_chunks,), np.int32)
    srcs = np.zeros((n, n_chunks), np.int32)
    start = 0
    for i, nc in enumerate(chunks_per_input):
        owner[start:start + nc] = i
        # Hold-first / hold-last source indices: repeating a block index across
        # grid steps lets Pallas skip the redundant DMA for non-owning inputs.
        srcs[i, :] = np.clip(np.arange(n_chunks) - start, 0, nc - 1)
        start += nc
    owner_arr = jnp.asarray(owner)
    srcs_flat = jnp.asarray(srcs.reshape(-1))

    def _in_map(i):
        def idx(r, c, owner_ref, srcs_ref):
            return (r, srcs_ref[i * n_chunks + c])
        return idx

    resident = 2 * tlr_b * lt * per_elem_bytes
    grid_spec = pltpu.PrefetchScalarGridSpec(
        num_scalar_prefetch=2,
        grid=(pl.cdiv(lead, tlr_b), n_chunks),
        in_specs=[pl.BlockSpec((tlr_b, lt), _in_map(i)) for i in range(n)],
        out_specs=pl.BlockSpec((tlr_b, lt),
                               lambda r, c, owner_ref, srcs_ref: (r, c)),
    )
    out2d = pl.pallas_call(
        _chunk_kernel,
        out_shape=jax.ShapeDtypeStruct((lead, tail_total), out_dtype),
        grid_spec=grid_spec,
        compiler_params=pltpu.CompilerParams(
            dimension_semantics=("parallel", "parallel"),
            vmem_limit_bytes=_limit(resident),
        ),
    )(owner_arr, srcs_flat, *flat_xs)
    return out2d.reshape(out_shape)


if __name__ == "__main__":
    key = jax.random.PRNGKey(0)
    k1, k2, k3 = jax.random.split(key, 3)

    # Small NCHW feature maps with differing channel counts (typical YOLO concat).
    x1 = jax.random.normal(k1, (2, 4, 16, 16), dtype=jnp.float32)
    x2 = jax.random.normal(k2, (2, 6, 16, 16), dtype=jnp.float32)
    x3 = jax.random.normal(k3, (2, 2, 16, 16), dtype=jnp.float32)

    ref = jnp.concatenate([x1, x2, x3], axis=1)

    # Default path (small rows -> full-tail row blocks).
    out = jax.block_until_ready(concat_pallas([x1, x2, x3], dimension=1))
    assert out.shape == ref.shape, (out.shape, ref.shape)
    assert out.dtype == ref.dtype, (out.dtype, ref.dtype)
    assert jnp.allclose(out, ref), "mismatch vs jnp.concatenate (full-row path)"

    # Force the lane-tiled (chunked) path by shrinking the VMEM budget; this is
    # the path large feature maps take on real workloads.
    out_tiled = jax.block_until_ready(
        concat_pallas([x1, x2, x3], dimension=1, vmem_budget_bytes=16 * 1024))
    assert jnp.allclose(out_tiled, ref), "mismatch on lane-tiled path"

    # lead >= 8 case (concat along a later dim) exercises 8-row sublane blocks.
    xa = jax.random.normal(k1, (2, 4, 16, 16), dtype=jnp.float32)
    xb = jax.random.normal(k2, (2, 4, 8, 16), dtype=jnp.float32)
    ref2 = jnp.concatenate([xa, xb], axis=2)
    out2 = jax.block_until_ready(concat_pallas([xa, xb], dimension=2))
    assert out2.shape == ref2.shape and jnp.allclose(out2, ref2), \
        "mismatch on dim=2 concat"

    # Mixed-dtype check exercises the fused in-kernel cast path.
    x2_bf16 = x2.astype(jnp.bfloat16)
    ref_m = jnp.concatenate([x1, x2_bf16, x3], axis=1)
    out_m = jax.block_until_ready(concat_pallas([x1, x2_bf16, x3], dimension=1))
    assert out_m.dtype == ref_m.dtype, (out_m.dtype, ref_m.dtype)
    assert jnp.allclose(out_m, ref_m), "mismatch on mixed-dtype concat"

    print("KERNEL_OK")
</pallas_src>

<mosaic_0001>
module attributes {stable_mosaic.version = 11 : i64} {
  func.func @kernel(%arg0: i32, %arg1: memref<2x1024xf32, #tpu.memory_space<vmem>>, %arg2: memref<2x1536xf32, #tpu.memory_space<vmem>>, %arg3: memref<2x512xf32, #tpu.memory_space<vmem>>, %arg4: memref<2x3072xf32, #tpu.memory_space<vmem>>) attributes {dimension_semantics = [#tpu.dimension_semantics<parallel>], iteration_bounds = array<i64: 1>, scalar_prefetch = 0 : i64, scratch_operands = 0 : i64, tpu.core_type = #tpu.core_type<tc>, window_params = [{transform_indices = @transform_0, window_bounds = array<i64: 2, 1024>}, {transform_indices = @transform_1, window_bounds = array<i64: 2, 1536>}, {transform_indices = @transform_2, window_bounds = array<i64: 2, 512>}, {transform_indices = @transform_3, window_bounds = array<i64: 2, 3072>}]} {
    %c0 = arith.constant 0 : index
    %c0_0 = arith.constant 0 : index
    %0 = vector.load %arg1[%c0, %c0_0] : memref<2x1024xf32, #tpu.memory_space<vmem>>, vector<2x1024xf32>
    %c0_1 = arith.constant 0 : index
    %c0_2 = arith.constant 0 : index
    %1 = vector.load %arg4[%c0_1, %c0_2] : memref<2x3072xf32, #tpu.memory_space<vmem>>, vector<2x1024xf32>
    tpu.vector_store %arg4[%c0_1, %c0_2], %0 {strides = array<i32>} : memref<2x3072xf32, #tpu.memory_space<vmem>>, vector<2x1024xf32>,
    %c0_3 = arith.constant 0 : index
    %c0_4 = arith.constant 0 : index
    %2 = vector.load %arg2[%c0_3, %c0_4] : memref<2x1536xf32, #tpu.memory_space<vmem>>, vector<2x1536xf32>
    %c0_5 = arith.constant 0 : index
    %c1024 = arith.constant 1024 : index
    %3 = vector.load %arg4[%c0_5, %c1024] : memref<2x3072xf32, #tpu.memory_space<vmem>>, vector<2x1536xf32>
    tpu.vector_store %arg4[%c0_5, %c1024], %2 {strides = array<i32>} : memref<2x3072xf32, #tpu.memory_space<vmem>>, vector<2x1536xf32>,
    %c0_6 = arith.constant 0 : index
    %c0_7 = arith.constant 0 : index
    %4 = vector.load %arg3[%c0_6, %c0_7] : memref<2x512xf32, #tpu.memory_space<vmem>>, vector<2x512xf32>
    %c0_8 = arith.constant 0 : index
    %c2560 = arith.constant 2560 : index
    %5 = vector.load %arg4[%c0_8, %c2560] : memref<2x3072xf32, #tpu.memory_space<vmem>>, vector<2x512xf32>
    tpu.vector_store %arg4[%c0_8, %c2560], %4 {strides = array<i32>} : memref<2x3072xf32, #tpu.memory_space<vmem>>, vector<2x512xf32>,
    return
  }
  func.func @transform_0(%arg0: i32) -> (i32, i32) {
    %c0_i32 = arith.constant 0 : i32
    %c0_i32_0 = arith.constant 0 : i32
    return %arg0, %c0_i32 : i32, i32
  }
  func.func @transform_1(%arg0: i32) -> (i32, i32) {
    %c0_i32 = arith.constant 0 : i32
    %c0_i32_0 = arith.constant 0 : i32
    return %arg0, %c0_i32 : i32, i32
  }
  func.func @transform_2(%arg0: i32) -> (i32, i32) {
    %c0_i32 = arith.constant 0 : i32
    %c0_i32_0 = arith.constant 0 : i32
    return %arg0, %c0_i32 : i32, i32
  }
  func.func @transform_3(%arg0: i32) -> (i32, i32) {
    %c0_i32 = arith.constant 0 : i32
    %c0_i32_0 = arith.constant 0 : i32
    return %arg0, %c0_i32 : i32, i32
  }
}

</mosaic_0001>

<llo_original>
// kernel: tpu_custom_call.1
$region0: #{tpu_custom_call.1}
  #allocation0 [shape = 'u32[]', space=smem, size = 0x4, offset = 0x4, fixed_abs, tag = 'smem constant byte address 0x4 - core index']
  #allocation1 [shape = 'u32[144,128]{1,0:T(1,128)}', space=vmem, size = 0x12000, scoped, tag = 'internal scratch']
  %s0 = inlined_call_operand.hbm [shape: f32[2,1024], index: 0, kind: input, shape index: {}]
  %s1 = inlined_call_operand.hbm [shape: f32[2,1536], index: 1, kind: input, shape index: {}]
  %s2 = inlined_call_operand.hbm [shape: f32[2,512], index: 2, kind: input, shape index: {}]
  %s3 = inlined_call_operand.hbm [shape: f32[2,3072], index: 3, kind: output, shape index: {}]
  %s4 = sld [smem:[#allocation0]]
  $region34: #{tpu_custom_call.1} parent=0
    _
  %s6 = ssub.s32 1, %s4
  %s7 = scalar_select 0, %s6, %s4
  $region1: #{tpu_custom_call.1} parent=0
    #allocation2 [shape = 'u8[8192]{0}', space=vmem, size = 0x2000, scoped, tag = 'input window, operand 0, single buffered']
    #allocation3 [shape = 's32[1]{0}', space=sflag, size = 0x4, scoped, tag = 'scoped memory for tpu_custom_call.1']
    #allocation4 [shape = 's32[1]{0}', space=sflag, size = 0x4, scoped, tag = 'scoped memory for tpu_custom_call.1']
    #allocation5 [shape = 'u8[12288]{0}', space=vmem, size = 0x3000, scoped, tag = 'input window, operand 1, single buffered']
    #allocation6 [shape = 's32[1]{0}', space=sflag, size = 0x4, scoped, tag = 'scoped memory for tpu_custom_call.1']
    #allocation7 [shape = 'u8[4096]{0}', space=vmem, size = 0x1000, scoped, tag = 'input window, operand 2, single buffered']
    #allocation8 [shape = 'u8[24576]{0}', space=vmem, size = 0x6000, scoped, tag = 'output window, operand 0, single buffered']
    %8 = vsyncpa [#allocation3], 0
    %9 = vsyncpa [#allocation6], 0
    %10 = vsyncpa [#allocation4], 0
    // Predicated region
    $region2: #{tpu_custom_call.1} parent=1 // pred_check
      _
    $region3: #{tpu_custom_call.1} parent=1 // pred_check_branch
      %12 = sbr.rel (0) target = $region5
    $region4: #{tpu_custom_call.1} parent=1 // pred_region
      %s14 = ssub.s32 256, 256
      %15 = vsyncadd [#allocation3], %s14
      %s17 = sshll.u32 [#allocation2], 4
      %s18 = int_to_ptr.vmem [resolvable:$true] %s17
      %20 = dma.hbm_to_vmem [thread:$0]  %s0, 256, %s18, [#allocation3]
    $region5: #{tpu_custom_call.1} parent=1 // pred_fallthru
      _
    // Predicated region
    $region6: #{tpu_custom_call.1} parent=1 // pred_check
      _
    $region7: #{tpu_custom_call.1} parent=1 // pred_check_branch
      %22 = sbr.rel (0) target = $region9
    $region8: #{tpu_custom_call.1} parent=1 // pred_region
      %s24 = ssub.s32 384, 384
      %25 = vsyncadd [#allocation6], %s24
      %s27 = sshll.u32 [#allocation5], 4
      %s28 = int_to_ptr.vmem [resolvable:$true] %s27
      %30 = dma.hbm_to_vmem [thread:$0]  %s1, 384, %s28, [#allocation6]
    $region9: #{tpu_custom_call.1} parent=1 // pred_fallthru
      _
    // Predicated region
    $region10: #{tpu_custom_call.1} parent=1 // pred_check
      _
    $region11: #{tpu_custom_call.1} parent=1 // pred_check_branch
      %32 = sbr.rel (0) target = $region13
    $region12: #{tpu_custom_call.1} parent=1 // pred_region
      %s34 = ssub.s32 128, 128
      %35 = vsyncadd [#allocation6], %s34
      %s37 = sshll.u32 [#allocation7], 4
      %s38 = int_to_ptr.vmem [resolvable:$true] %s37
      %40 = dma.hbm_to_vmem [thread:$0]  %s2, 128, %s38, [#allocation6]
    $region13: #{tpu_custom_call.1} parent=1 // pred_fallthru
      _
    // Predicated region
    $region14: #{tpu_custom_call.1} parent=1 // pred_check
      _
    $region15: #{tpu_custom_call.1} parent=1 // pred_check_branch
      %42 = sbr.rel (0) target = $region17
    $region16: #{tpu_custom_call.1} parent=1 // pred_region
      %43 = dma.done [#allocation3], 256
    $region17: #{tpu_custom_call.1} parent=1 // pred_fallthru
      _
    // Predicated region
    $region18: #{tpu_custom_call.1} parent=1 // pred_check
      _
    $region19: #{tpu_custom_call.1} parent=1 // pred_check_branch
      %45 = sbr.rel (0) target = $region21
    $region20: #{tpu_custom_call.1} parent=1 // pred_region
      %46 = dma.done [#allocation6], 384
    $region21: #{tpu_custom_call.1} parent=1 // pred_fallthru
      _
    // Predicated region
    $region22: #{tpu_custom_call.1} parent=1 // pred_check
      _
    $region23: #{tpu_custom_call.1} parent=1 // pred_check_branch
      %48 = sbr.rel (0) target = $region25
    $region24: #{tpu_custom_call.1} parent=1 // pred_region
      %49 = dma.done [#allocation6], 128
    $region25: #{tpu_custom_call.1} parent=1 // pred_fallthru
      _
    %v50 = vld [vmem:[#allocation2] sm:$0xff]
    %v51 = vld [vmem:[#allocation2 + $0x8] sm:$0xff]
    %52 = vst [vmem:[#allocation8] sm:$0xff] %v50
    %53 = vst [vmem:[#allocation8 + $0x8] sm:$0xff] %v51
    %v54 = vld [vmem:[#allocation5] sm:$0xff]
    %v55 = vld [vmem:[#allocation5 + $0x8] sm:$0xff]
    %v56 = vld [vmem:[#allocation5 + $0x10] sm:$0xff]
    %57 = vst [vmem:[#allocation8 + $0x10] sm:$0xff] %v54
    %58 = vst [vmem:[#allocation8 + $0x18] sm:$0xff] %v55
    %59 = vst [vmem:[#allocation8 + $0x20] sm:$0xff] %v56
    %v60 = vld [vmem:[#allocation7] sm:$0xff]
    %61 = vst [vmem:[#allocation8 + $0x28] sm:$0xff] %v60
    // Predicated region
    $region26: #{tpu_custom_call.1} parent=1 // pred_check
      _
    $region27: #{tpu_custom_call.1} parent=1 // pred_check_branch
      %63 = sbr.rel (0) target = $region29
    $region28: #{tpu_custom_call.1} parent=1 // pred_region
      %s65 = ssub.s32 768, 768
      %66 = vsyncadd [#allocation4], %s65
      %s68 = sshll.u32 [#allocation8], 4
      %s69 = int_to_ptr.vmem [resolvable:$true] %s68
      %71 = dma.vmem_to_hbm [thread:$0]  %s69, 768, %s3, [#allocation4]
    $region29: #{tpu_custom_call.1} parent=1 // pred_fallthru
      _
    // Predicated region
    $region30: #{tpu_custom_call.1} parent=1 // pred_check
      _
    $region31: #{tpu_custom_call.1} parent=1 // pred_check_branch
      %73 = sbr.rel (0) target = $region33
    $region32: #{tpu_custom_call.1} parent=1 // pred_region
      %74 = dma.done [#allocation4], 768
    $region33: #{tpu_custom_call.1} parent=1 // pred_fallthru
      _
    %75 = vsyncpa [#allocation3], 1
    %76 = vsyncpa [#allocation6], 1
    %77 = vsyncpa [#allocation4], 1

</llo_original>
